<compile_context>
chip_gen: v7x
topology: tpu7x:2x2x1
jax: 0.10.0
libtpu: 0.0.40
codegen_flags: <defaults>
</compile_context>

<pallas_src>
import functools

import jax
import jax.numpy as jnp
from jax.experimental import pallas as pl
from jax.experimental.pallas import tpu as pltpu


# ----------------------------------------------------------------------------
# Helpers
# ----------------------------------------------------------------------------
def _round_up(x, m):
    return ((x + m - 1) // m) * m


# ----------------------------------------------------------------------------
# Pallas kernels: tiled (patches @ weight) + bias (+ LeakyReLU), f32 accumulate
# ----------------------------------------------------------------------------
def _gemm_bias_act_kernel(a_ref, b_ref, bias_ref, o_ref, acc_ref, *, neg_slope):
    """Multi-K-step tile: f32 VMEM accumulator, init/finalize via pl.when."""
    k = pl.program_id(2)

    @pl.when(k == 0)
    def _():
        acc_ref[...] = jnp.zeros_like(acc_ref)

    acc_ref[...] += jnp.dot(a_ref[...], b_ref[...],
                            preferred_element_type=jnp.float32)

    @pl.when(k == pl.num_programs(2) - 1)
    def _():
        out = acc_ref[...] + bias_ref[...]          # (1, tn) bias broadcasts
        if neg_slope is not None:
            out = jnp.where(out >= 0.0, out, jnp.float32(neg_slope) * out)
        o_ref[...] = out.astype(o_ref.dtype)


def _gemm_bias_act_single_k_kernel(a_ref, b_ref, bias_ref, o_ref, *, neg_slope):
    """Single-K-step tile: no scratch, epilogue straight into the output."""
    out = jnp.dot(a_ref[...], b_ref[...],
                  preferred_element_type=jnp.float32) + bias_ref[...]
    if neg_slope is not None:
        out = jnp.where(out >= 0.0, out, jnp.float32(neg_slope) * out)
    o_ref[...] = out.astype(o_ref.dtype)


def matmul_bias_act(a, b, bias, *, neg_slope=None, out_dtype=jnp.float32,
                    max_tm=512, max_tn=512, max_tk=512):
    """a: [M, K], b: [K, N], bias: [N] or None -> [M, N] in out_dtype.

    Operands are used in bf16 (f32 MXU accumulation).  Dims <= max_tile become
    full-dim blocks (no padding at all); larger dims are tiled at a 512-sized
    (128-lane-aligned) tile.  When the Pallas-path callers pre-align K to 128
    and keep activations bf16, the pads/casts below are no-ops.
    """
    M, K = a.shape
    K2, N = b.shape
    assert K == K2, (K, K2)
    if bias is None:
        bias = jnp.zeros((N,), jnp.float32)

    def _pick(dim, max_tile):
        if dim <= max_tile:
            return dim, dim                    # full-dim block, no padding
        return max_tile, _round_up(dim, max_tile)

    tm, Mp = _pick(M, max_tm)
    tn, Np = _pick(N, max_tn)
    if K <= max_tk:
        tk, Kp = K, K
    elif K % 1024 == 0:
        tk, Kp = 1024, K                        # deeper layers: bigger K tile
    else:
        tk, Kp = max_tk, _round_up(K, max_tk)

    a = a.astype(jnp.bfloat16)                  # no-op when caller passes bf16
    b = b.astype(jnp.bfloat16)
    if Mp > M or Kp > K:
        a = jnp.pad(a, ((0, Mp - M), (0, Kp - K)))
    if Kp > K or Np > N:
        b = jnp.pad(b, ((0, Kp - K), (0, Np - N)))
    bias_p = bias.astype(jnp.float32)
    if Np > N:
        bias_p = jnp.pad(bias_p, (0, Np - N))
    bias_p = bias_p.reshape(1, Np)

    n_k = Kp // tk
    if n_k == 1:
        grid = (Mp // tm, Np // tn)
        kern = functools.partial(_gemm_bias_act_single_k_kernel,
                                 neg_slope=neg_slope)
        in_specs = [pl.BlockSpec((tm, tk), lambda i, j: (i, 0)),
                    pl.BlockSpec((tk, tn), lambda i, j: (0, j)),
                    pl.BlockSpec((1, tn), lambda i, j: (0, j))]
        out_specs = pl.BlockSpec((tm, tn), lambda i, j: (i, j))
        scratch = ()
        dims = ("parallel", "parallel")
    else:
        grid = (Mp // tm, Np // tn, n_k)
        kern = functools.partial(_gemm_bias_act_kernel, neg_slope=neg_slope)
        in_specs = [pl.BlockSpec((tm, tk), lambda i, j, k: (i, k)),
                    pl.BlockSpec((tk, tn), lambda i, j, k: (k, j)),
                    pl.BlockSpec((1, tn), lambda i, j, k: (0, j))]
        out_specs = pl.BlockSpec((tm, tn), lambda i, j, k: (i, j))
        scratch = (pltpu.VMEM((tm, tn), jnp.float32),)
        dims = ("parallel", "parallel", "arbitrary")

    # Per-generation sweep candidates (kept off for portability):
    #  - pipeline_mode=pl.Buffered(3) on the A/B specs (v6e/v7x, DMA-exposed
    #    early layers).
    #  - pltpu.CORE_PARALLEL on the M axis (v7x, 2 TensorCores).
    out = pl.pallas_call(
        kern,
        out_shape=jax.ShapeDtypeStruct((Mp, Np), out_dtype),
        grid_spec=pltpu.PrefetchScalarGridSpec(
            num_scalar_prefetch=0,
            grid=grid,
            in_specs=in_specs,
            out_specs=out_specs,
            scratch_shapes=scratch,
        ),
        compiler_params=pltpu.CompilerParams(
            dimension_semantics=dims,
            vmem_limit_bytes=32 * 1024 * 1024,
        ),
    )(a, b, bias_p)

    if Mp > M or Np > N:
        out = out[:M, :N]
    return out


# ----------------------------------------------------------------------------
# im2col glue on NHWC activations (pure data movement, plain JAX)
# ----------------------------------------------------------------------------
def _im2col_nhwc(x, kh, kw, stride, padding):
    """x: [B, H, W, C] -> patches [B*OH*OW, kh*kw*C] (same dtype as x)."""
    B, H, W, C = x.shape
    xp = jnp.pad(x, ((0, 0), (padding, padding), (padding, padding), (0, 0)))
    OH = (H + 2 * padding - kh) // stride + 1
    OW = (W + 2 * padding - kw) // stride + 1
    cols = []
    for i in range(kh):
        for j in range(kw):
            cols.append(xp[:, i:i + stride * OH:stride,
                           j:j + stride * OW:stride, :])     # [B, OH, OW, C]
    patches = jnp.stack(cols, axis=3)                         # [B, OH, OW, kh*kw, C]
    patches = patches.reshape(B * OH * OW, kh * kw * C)
    return patches, OH, OW


def conv2d_nhwc_pallas(x, wmat, bias, *, kh, kw, stride, padding,
                       neg_slope=None, out_dtype=jnp.bfloat16):
    """NHWC conv (PyTorch cross-correlation semantics) via im2col + Pallas GEMM.

    x: [B, H, W, C] bf16 (C already lane-friendly), wmat: [kh*kw*C, OC] bf16
    (pre-transposed/padded once at init), bias: [OC] f32 or None.
    Returns [B, OH, OW, OC].
    """
    B, H, W, C = x.shape
    K, OC = wmat.shape
    assert K == kh * kw * C, (K, kh, kw, C)
    patches, OH, OW = _im2col_nhwc(x, kh, kw, stride, padding)   # bf16, aligned K
    out = matmul_bias_act(patches, wmat, bias, neg_slope=neg_slope,
                          out_dtype=out_dtype)                    # [M, OC]
    return out.reshape(B, OH, OW, OC)


# ----------------------------------------------------------------------------
# Discriminator (StarGAN PatchGAN) parameters
# ----------------------------------------------------------------------------
def init_discriminator_params(key, image_size=16, conv_dim=8, c_dim=5, repeat_num=2):
    """Raw f32 parameters in PyTorch layouts (used by the reference)."""
    params = {"main": []}
    k = key

    def nrm(k, shape, scale=0.05):
        return scale * jax.random.normal(k, shape, dtype=jnp.float32)

    # first conv: 3 -> conv_dim, k=4, s=2, p=1 (with bias)
    k, k1, k2 = jax.random.split(k, 3)
    params["main"].append({"w": nrm(k1, (conv_dim, 3, 4, 4)), "b": nrm(k2, (conv_dim,))})
    curr_dim = conv_dim
    for _ in range(1, repeat_num):
        k, k1, k2 = jax.random.split(k, 3)
        params["main"].append({"w": nrm(k1, (curr_dim * 2, curr_dim, 4, 4)),
                               "b": nrm(k2, (curr_dim * 2,))})
        curr_dim *= 2
    kernel_size = image_size // (2 ** repeat_num)
    k, k1, k2 = jax.random.split(k, 3)
    params["conv1_w"] = nrm(k1, (1, curr_dim, 3, 3))                           # bias=False
    params["conv2_w"] = nrm(k2, (c_dim, curr_dim, kernel_size, kernel_size))   # bias=False
    params["kernel_size"] = kernel_size
    return params


def prepare_pallas_params(params):
    """One-time weight relayout (perf review: hoist per-call transpose/cast/pad)."""
    prepared = {"layers": []}
    for layer in params["main"]:
        w, b = layer["w"], layer["b"]                 # [OC, C, KH, KW], [OC]
        oc, c, kh, kw = w.shape
        c_pad = _round_up(c, 8)                       # K = kh*kw*c_pad is 128-aligned
        wmat = jnp.transpose(w, (2, 3, 1, 0))         # [KH, KW, C, OC]
        if c_pad > c:
            wmat = jnp.pad(wmat, ((0, 0), (0, 0), (0, c_pad - c), (0, 0)))
        prepared["layers"].append({
            "wmat": wmat.reshape(kh * kw * c_pad, oc).astype(jnp.bfloat16),
            "bias": b.astype(jnp.float32),
            "kh": kh, "kw": kw, "c_in_pad": c_pad, "stride": 2, "padding": 1,
        })
    # Tiny heads (OC=1 / OC=c_dim): plain XLA convs per perf review.
    prepared["conv1_w_hwio"] = jnp.transpose(
        params["conv1_w"], (2, 3, 1, 0)).astype(jnp.float32)
    prepared["conv2_w_hwio"] = jnp.transpose(
        params["conv2_w"], (2, 3, 1, 0)).astype(jnp.float32)
    return prepared


# ----------------------------------------------------------------------------
# Forward pass
# ----------------------------------------------------------------------------
def discriminator_forward(prepared, x):
    """x: [B, 3, S, S] NCHW f32 -> (out_src [B,1,h,w] NCHW f32, out_cls [B, c_dim] f32).

    Note: matmul operands and inter-layer activations are intentionally bf16
    (f32 MXU accumulation, f32 epilogue); this deviates from the f32 PyTorch
    reference by ~1e-3..1e-2 absolute (covered by the test tolerance below).
    """
    h = jnp.transpose(x, (0, 2, 3, 1)).astype(jnp.bfloat16)    # NCHW->NHWC + bf16 once
    for layer in prepared["layers"]:
        c = h.shape[-1]
        if layer["c_in_pad"] > c:                              # zero-pad channels so the
            h = jnp.pad(h, ((0, 0), (0, 0), (0, 0),            # patch matrix is born
                            (0, layer["c_in_pad"] - c)))       # lane-aligned (K % 128 == 0)
        h = conv2d_nhwc_pallas(h, layer["wmat"], layer["bias"],
                               kh=layer["kh"], kw=layer["kw"],
                               stride=layer["stride"], padding=layer["padding"],
                               neg_slope=0.01, out_dtype=jnp.bfloat16)

    hf = h.astype(jnp.float32)
    # Heads: negligible FLOPs with OC=1 / OC=c_dim -> plain XLA convs (review).
    out_src = jax.lax.conv_general_dilated(
        hf, prepared["conv1_w_hwio"], window_strides=(1, 1),
        padding=[(1, 1), (1, 1)], dimension_numbers=("NHWC", "HWIO", "NHWC"))
    out_cls_map = jax.lax.conv_general_dilated(
        hf, prepared["conv2_w_hwio"], window_strides=(1, 1),
        padding=[(0, 0), (0, 0)], dimension_numbers=("NHWC", "HWIO", "NHWC"))
    # PatchGAN class head must collapse to 1x1 spatial (kernel == feature size).
    assert out_cls_map.shape[1] == 1 and out_cls_map.shape[2] == 1, out_cls_map.shape

    out_src = jnp.transpose(out_src, (0, 3, 1, 2))             # NHWC -> NCHW at boundary
    out_cls = out_cls_map.reshape(out_cls_map.shape[0], out_cls_map.shape[3])
    return out_src, out_cls


# ----------------------------------------------------------------------------
# Pure-JAX f32 reference (lax.conv, NCHW) for correctness checking
# ----------------------------------------------------------------------------
def _reference_forward(params, x):
    def conv(x, w, b, stride, padding):
        y = jax.lax.conv_general_dilated(
            x, w, window_strides=(stride, stride),
            padding=[(padding, padding), (padding, padding)],
            dimension_numbers=("NCHW", "OIHW", "NCHW"))
        if b is not None:
            y = y + b.reshape(1, -1, 1, 1)
        return y

    h = x
    for layer in params["main"]:
        h = conv(h, layer["w"], layer["b"], 2, 1)
        h = jnp.where(h >= 0, h, 0.01 * h)
    out_src = conv(h, params["conv1_w"], None, 1, 1)
    out_cls = conv(h, params["conv2_w"], None, 1, 0)
    return out_src, out_cls.reshape(out_cls.shape[0], out_cls.shape[1])


if __name__ == "__main__":
    # Small, module-consistent shapes: image_size=16, conv_dim=8, c_dim=5, repeat_num=2.
    IMAGE_SIZE, CONV_DIM, C_DIM, REPEAT = 16, 8, 5, 2
    BATCH = 2

    key = jax.random.PRNGKey(0)
    k_params, k_x = jax.random.split(key)
    params = init_discriminator_params(k_params, IMAGE_SIZE, CONV_DIM, C_DIM, REPEAT)
    prepared = prepare_pallas_params(params)
    x = jax.random.normal(k_x, (BATCH, 3, IMAGE_SIZE, IMAGE_SIZE), dtype=jnp.float32)

    fwd = jax.jit(lambda xx: discriminator_forward(prepared, xx))
    out_src, out_cls = fwd(x)
    out_src = jax.block_until_ready(out_src)
    out_cls = jax.block_until_ready(out_cls)

    # Shape sanity checks (PatchGAN src map + class logits).
    final_sp = IMAGE_SIZE // (2 ** REPEAT)
    assert out_src.shape == (BATCH, 1, final_sp, final_sp), out_src.shape
    assert out_cls.shape == (BATCH, C_DIM), out_cls.shape
    assert bool(jnp.all(jnp.isfinite(out_src))) and bool(jnp.all(jnp.isfinite(out_cls)))

    # Numerical check against the f32 lax.conv reference (tolerance covers the
    # intentional bf16 matmul operands / bf16 inter-layer activations).
    ref_src, ref_cls = _reference_forward(params, x)
    err_src = float(jnp.max(jnp.abs(out_src - ref_src)))
    err_cls = float(jnp.max(jnp.abs(out_cls - ref_cls)))
    assert err_src < 3e-2, err_src
    assert err_cls < 3e-2, err_cls

    # Standalone check of the multi-K accumulator kernel path (the tiny
    # discriminator shapes above all resolve to a single K step).
    kk = jax.random.split(jax.random.PRNGKey(1), 3)
    ga = jax.random.normal(kk[0], (1024, 1536), jnp.float32)
    gb = jax.random.normal(kk[1], (1536, 256), jnp.float32)
    gbias = jax.random.normal(kk[2], (256,), jnp.float32)
    gout = jax.block_until_ready(
        matmul_bias_act(ga, gb, gbias, neg_slope=0.01, out_dtype=jnp.float32))
    gref = jnp.dot(ga.astype(jnp.bfloat16).astype(jnp.float32),
                   gb.astype(jnp.bfloat16).astype(jnp.float32),
                   precision=jax.lax.Precision.HIGHEST) + gbias
    gref = jnp.where(gref >= 0, gref, 0.01 * gref)
    gerr = float(jnp.max(jnp.abs(gout - gref)))
    assert gerr < 2e-2, gerr

    print("KERNEL_OK")
</pallas_src>

<mosaic_0001>
module attributes {stable_mosaic.version = 11 : i64} {
  func.func @_gemm_bias_act_single_k_kernel(%arg0: i32, %arg1: i32, %arg2: memref<128x128xbf16, #tpu.memory_space<vmem>>, %arg3: memref<128x8xbf16, #tpu.memory_space<vmem>>, %arg4: memref<1x8xf32, #tpu.memory_space<vmem>>, %arg5: memref<128x8xbf16, #tpu.memory_space<vmem>>) attributes {dimension_semantics = [#tpu.dimension_semantics<parallel>, #tpu.dimension_semantics<parallel>], iteration_bounds = array<i64: 1, 1>, scalar_prefetch = 0 : i64, scratch_operands = 0 : i64, tpu.core_type = #tpu.core_type<tc>, window_params = [{transform_indices = @transform_0, window_bounds = array<i64: 128, 128>}, {transform_indices = @transform_1, window_bounds = array<i64: 128, 8>}, {transform_indices = @transform_2, window_bounds = array<i64: 1, 8>}, {transform_indices = @transform_3, window_bounds = array<i64: 128, 8>}]} {
    %c0 = arith.constant 0 : index
    %c0_0 = arith.constant 0 : index
    %0 = vector.load %arg2[%c0, %c0_0] : memref<128x128xbf16, #tpu.memory_space<vmem>>, vector<128x128xbf16>
    %c0_1 = arith.constant 0 : index
    %c0_2 = arith.constant 0 : index
    %1 = vector.load %arg3[%c0_1, %c0_2] : memref<128x8xbf16, #tpu.memory_space<vmem>>, vector<128x8xbf16>
    %cst = arith.constant dense<0.000000e+00> : vector<128x8xf32>
    %2 = tpu.matmul %0, %1, %cst {dimension_numbers = #tpu.dot_dimension_numbers<[1], [0], [0], [1], [0, 0, 1, 1], [], []>} : vector<128x128xbf16>, vector<128x8xbf16>, vector<128x8xf32> -> vector<128x8xf32>
    %c0_3 = arith.constant 0 : index
    %c0_4 = arith.constant 0 : index
    %3 = vector.load %arg4[%c0_3, %c0_4] : memref<1x8xf32, #tpu.memory_space<vmem>>, vector<1x8xf32>
    %4 = vector.broadcast %3 : vector<1x8xf32> to vector<128x8xf32>
    %5 = arith.addf %2, %4 : vector<128x8xf32>
    %cst_5 = arith.constant 0.000000e+00 : f32
    %6 = vector.broadcast %cst_5 : f32 to vector<128x8xf32>
    %7 = arith.cmpf oge, %5, %6 : vector<128x8xf32>
    %cst_6 = arith.constant 0.00999999977 : f32
    %8 = vector.broadcast %cst_6 : f32 to vector<128x8xf32>
    %9 = arith.mulf %8, %5 : vector<128x8xf32>
    %10 = arith.select %7, %5, %9 : vector<128x8xi1>, vector<128x8xf32>
    %11 = arith.truncf %10 : vector<128x8xf32> to vector<128x8xbf16>
    %c0_7 = arith.constant 0 : index
    %c0_8 = arith.constant 0 : index
    %12 = vector.load %arg5[%c0_7, %c0_8] : memref<128x8xbf16, #tpu.memory_space<vmem>>, vector<128x8xbf16>
    tpu.vector_store %arg5[%c0_7, %c0_8], %11 {strides = array<i32>} : memref<128x8xbf16, #tpu.memory_space<vmem>>, vector<128x8xbf16>,
    return
  }
  func.func @transform_0(%arg0: i32, %arg1: i32) -> (i32, i32) {
    %c0_i32 = arith.constant 0 : i32
    %c0_i32_0 = arith.constant 0 : i32
    return %arg0, %c0_i32 : i32, i32
  }
  func.func @transform_1(%arg0: i32, %arg1: i32) -> (i32, i32) {
    %c0_i32 = arith.constant 0 : i32
    %c0_i32_0 = arith.constant 0 : i32
    return %c0_i32, %arg1 : i32, i32
  }
  func.func @transform_2(%arg0: i32, %arg1: i32) -> (i32, i32) {
    %c0_i32 = arith.constant 0 : i32
    %c0_i32_0 = arith.constant 0 : i32
    return %c0_i32, %arg1 : i32, i32
  }
  func.func @transform_3(%arg0: i32, %arg1: i32) -> (i32, i32) {
    %c0_i32 = arith.constant 0 : i32
    return %arg0, %arg1 : i32, i32
  }
}

module attributes {stable_mosaic.version = 11 : i64} {
  func.func @_gemm_bias_act_single_k_kernel(%arg0: i32, %arg1: i32, %arg2: memref<32x128xbf16, #tpu.memory_space<vmem>>, %arg3: memref<128x16xbf16, #tpu.memory_space<vmem>>, %arg4: memref<1x16xf32, #tpu.memory_space<vmem>>, %arg5: memref<32x16xbf16, #tpu.memory_space<vmem>>) attributes {dimension_semantics = [#tpu.dimension_semantics<parallel>, #tpu.dimension_semantics<parallel>], iteration_bounds = array<i64: 1, 1>, scalar_prefetch = 0 : i64, scratch_operands = 0 : i64, tpu.core_type = #tpu.core_type<tc>, window_params = [{transform_indices = @transform_0, window_bounds = array<i64: 32, 128>}, {transform_indices = @transform_1, window_bounds = array<i64: 128, 16>}, {transform_indices = @transform_2, window_bounds = array<i64: 1, 16>}, {transform_indices = @transform_3, window_bounds = array<i64: 32, 16>}]} {
    %c0 = arith.constant 0 : index
    %c0_0 = arith.constant 0 : index
    %0 = vector.load %arg2[%c0, %c0_0] : memref<32x128xbf16, #tpu.memory_space<vmem>>, vector<32x128xbf16>
    %c0_1 = arith.constant 0 : index
    %c0_2 = arith.constant 0 : index
    %1 = vector.load %arg3[%c0_1, %c0_2] : memref<128x16xbf16, #tpu.memory_space<vmem>>, vector<128x16xbf16>
    %cst = arith.constant dense<0.000000e+00> : vector<32x16xf32>
    %2 = tpu.matmul %0, %1, %cst {dimension_numbers = #tpu.dot_dimension_numbers<[1], [0], [0], [1], [0, 0, 1, 1], [], []>} : vector<32x128xbf16>, vector<128x16xbf16>, vector<32x16xf32> -> vector<32x16xf32>
    %c0_3 = arith.constant 0 : index
    %c0_4 = arith.constant 0 : index
    %3 = vector.load %arg4[%c0_3, %c0_4] : memref<1x16xf32, #tpu.memory_space<vmem>>, vector<1x16xf32>
    %4 = vector.broadcast %3 : vector<1x16xf32> to vector<32x16xf32>
    %5 = arith.addf %2, %4 : vector<32x16xf32>
    %cst_5 = arith.constant 0.000000e+00 : f32
    %6 = vector.broadcast %cst_5 : f32 to vector<32x16xf32>
    %7 = arith.cmpf oge, %5, %6 : vector<32x16xf32>
    %cst_6 = arith.constant 0.00999999977 : f32
    %8 = vector.broadcast %cst_6 : f32 to vector<32x16xf32>
    %9 = arith.mulf %8, %5 : vector<32x16xf32>
    %10 = arith.select %7, %5, %9 : vector<32x16xi1>, vector<32x16xf32>
    %11 = arith.truncf %10 : vector<32x16xf32> to vector<32x16xbf16>
    %c0_7 = arith.constant 0 : index
    %c0_8 = arith.constant 0 : index
    %12 = vector.load %arg5[%c0_7, %c0_8] : memref<32x16xbf16, #tpu.memory_space<vmem>>, vector<32x16xbf16>
    tpu.vector_store %arg5[%c0_7, %c0_8], %11 {strides = array<i32>} : memref<32x16xbf16, #tpu.memory_space<vmem>>, vector<32x16xbf16>,
    return
  }
  func.func @transform_0(%arg0: i32, %arg1: i32) -> (i32, i32) {
    %c0_i32 = arith.constant 0 : i32
    %c0_i32_0 = arith.constant 0 : i32
    return %arg0, %c0_i32 : i32, i32
  }
  func.func @transform_1(%arg0: i32, %arg1: i32) -> (i32, i32) {
    %c0_i32 = arith.constant 0 : i32
    %c0_i32_0 = arith.constant 0 : i32
    return %c0_i32, %arg1 : i32, i32
  }
  func.func @transform_2(%arg0: i32, %arg1: i32) -> (i32, i32) {
    %c0_i32 = arith.constant 0 : i32
    %c0_i32_0 = arith.constant 0 : i32
    return %c0_i32, %arg1 : i32, i32
  }
  func.func @transform_3(%arg0: i32, %arg1: i32) -> (i32, i32) {
    %c0_i32 = arith.constant 0 : i32
    return %arg0, %arg1 : i32, i32
  }
}

</mosaic_0001>

<llo_original>
// kernel: _lambda_.2
$region0: #{_lambda_.2}
  #allocation0 [shape = 'u32[]', space=smem, size = 0x4, offset = 0x4, fixed_abs, tag = 'smem constant byte address 0x4 - core index']
  #allocation1 [shape = 'u32[144,128]{1,0:T(1,128)}', space=vmem, size = 0x12000, scoped, tag = 'internal scratch']
  %s0 = inlined_call_operand.vmem [shape: bf16[128,128], index: 0, kind: input, shape index: {}]
  %s1 = inlined_call_operand.vmem [shape: bf16[128,8], index: 1, kind: input, shape index: {}]
  %s2 = inlined_call_operand.vmem [shape: f32[1,8], index: 2, kind: input, shape index: {}]
  %s3 = inlined_call_operand.vmem [shape: bf16[128,8], index: 3, kind: output, shape index: {}]
  %s4 = sld [smem:[#allocation0]]
  $region22: #{_lambda_.2} parent=0
    _
  %s6 = ssub.s32 1, %s4
  %s7 = scalar_select 0, %s6, %s4
  // Predicated region
  $region2: #{_lambda_.2} parent=0 // pred_check
    _
  $region3: #{_lambda_.2} parent=0 // pred_check_branch
    %9 = sbr.rel (0) target = $region5
  $region4: #{_lambda_.2} parent=0 // pred_region
    _
  $region5: #{_lambda_.2} parent=0 // pred_fallthru
    _
  // Predicated region
  $region6: #{_lambda_.2} parent=0 // pred_check
    _
  $region7: #{_lambda_.2} parent=0 // pred_check_branch
    %11 = sbr.rel (0) target = $region9
  $region8: #{_lambda_.2} parent=0 // pred_region
    _
  $region9: #{_lambda_.2} parent=0 // pred_fallthru
    _
  // Predicated region
  $region10: #{_lambda_.2} parent=0 // pred_check
    _
  $region11: #{_lambda_.2} parent=0 // pred_check_branch
    %13 = sbr.rel (0) target = $region13
  $region12: #{_lambda_.2} parent=0 // pred_region
    _
  $region13: #{_lambda_.2} parent=0 // pred_fallthru
    _
  %v15 = vld [vmem:[%s0] sm:$0xf]
  %v16 = vld [vmem:[%s0 + $0x4] sm:$0xf]
  %v17 = vld [vmem:[%s0 + $0x8] sm:$0xf]
  %v18 = vld [vmem:[%s0 + $0xc] sm:$0xf]
  %v19 = vld [vmem:[%s0 + $0x10] sm:$0xf]
  %v20 = vld [vmem:[%s0 + $0x14] sm:$0xf]
  %v21 = vld [vmem:[%s0 + $0x18] sm:$0xf]
  %v22 = vld [vmem:[%s0 + $0x1c] sm:$0xf]
  %v23 = vld [vmem:[%s0 + $0x20] sm:$0xf]
  %v24 = vld [vmem:[%s0 + $0x24] sm:$0xf]
  %v25 = vld [vmem:[%s0 + $0x28] sm:$0xf]
  %v26 = vld [vmem:[%s0 + $0x2c] sm:$0xf]
  %v27 = vld [vmem:[%s0 + $0x30] sm:$0xf]
  %v28 = vld [vmem:[%s0 + $0x34] sm:$0xf]
  %v29 = vld [vmem:[%s0 + $0x38] sm:$0xf]
  %v30 = vld [vmem:[%s0 + $0x3c] sm:$0xf]
  %v31 = vld [vmem:[%s1] sm:$0xf]
  %v32 = vld [vmem:[%s1 + $0x4] sm:$0xf]
  %v33 = vld [vmem:[%s1 + $0x8] sm:$0xf]
  %v34 = vld [vmem:[%s1 + $0xc] sm:$0xf]
  %v35 = vld [vmem:[%s1 + $0x10] sm:$0xf]
  %v36 = vld [vmem:[%s1 + $0x14] sm:$0xf]
  %v37 = vld [vmem:[%s1 + $0x18] sm:$0xf]
  %v38 = vld [vmem:[%s1 + $0x1c] sm:$0xf]
  %v39 = vld [vmem:[%s1 + $0x20] sm:$0xf]
  %v40 = vld [vmem:[%s1 + $0x24] sm:$0xf]
  %v41 = vld [vmem:[%s1 + $0x28] sm:$0xf]
  %v42 = vld [vmem:[%s1 + $0x2c] sm:$0xf]
  %v43 = vld [vmem:[%s1 + $0x30] sm:$0xf]
  %v44 = vld [vmem:[%s1 + $0x34] sm:$0xf]
  %v45 = vld [vmem:[%s1 + $0x38] sm:$0xf]
  %v46 = vld [vmem:[%s1 + $0x3c] sm:$0xf]
  %v47 = vld [vmem:[%s2] sm:$0x1]
  %v49 = vlaneseq
  %v50 = vshrl.u32 %v49, 7
  %v51 = vsub.s32 0, %v50
  %v52 = vrot.slane %v47, %v51
  %v70 = vunpack.c.l.b16 %v15
  %v71 = vunpack.c.l.b16 %v16
  %v72 = vunpack.c.l.b16 %v17
  %v73 = vunpack.c.l.b16 %v18
  %v74 = vunpack.c.l.b16 %v19
  %v75 = vunpack.c.l.b16 %v20
  %v76 = vunpack.c.l.b16 %v21
  %v77 = vunpack.c.l.b16 %v22
  %v78 = vunpack.c.l.b16 %v23
  %v79 = vunpack.c.l.b16 %v24
  %v80 = vunpack.c.l.b16 %v25
  %v81 = vunpack.c.l.b16 %v26
  %v82 = vunpack.c.l.b16 %v27
  %v83 = vunpack.c.l.b16 %v28
  %v84 = vunpack.c.l.b16 %v29
  %v85 = vunpack.c.l.b16 %v30
  %v86 = vpack.c.b16 %v71, %v70
  %v87 = vpack.c.b16 %v73, %v72
  %v88 = vpack.c.b16 %v75, %v74
  %v89 = vpack.c.b16 %v77, %v76
  %v90 = vpack.c.b16 %v79, %v78
  %v91 = vpack.c.b16 %v81, %v80
  %v92 = vpack.c.b16 %v83, %v82
  %v93 = vpack.c.b16 %v85, %v84
  %v118 = vunpack.c.l.b16 %v31
  %v119 = vunpack.c.l.b16 %v32
  %v120 = vunpack.c.l.b16 %v33
  %v121 = vunpack.c.l.b16 %v34
  %v122 = vunpack.c.l.b16 %v35
  %v123 = vunpack.c.l.b16 %v36
  %v124 = vunpack.c.l.b16 %v37
  %v125 = vunpack.c.l.b16 %v38
  %v126 = vunpack.c.l.b16 %v39
  %v127 = vunpack.c.l.b16 %v40
  %v128 = vunpack.c.l.b16 %v41
  %v129 = vunpack.c.l.b16 %v42
  %v130 = vunpack.c.l.b16 %v43
  %v131 = vunpack.c.l.b16 %v44
  %v132 = vunpack.c.l.b16 %v45
  %v133 = vunpack.c.l.b16 %v46
  %v134 = vpack.c.b16 %v119, %v118
  %v135 = vpack.c.b16 %v121, %v120
  %v136 = vpack.c.b16 %v123, %v122
  %v137 = vpack.c.b16 %v125, %v124
  %v138 = vpack.c.b16 %v127, %v126
  %v139 = vpack.c.b16 %v129, %v128
  %v140 = vpack.c.b16 %v131, %v130
  %v141 = vpack.c.b16 %v133, %v132
  %150 = vmatprep.subr.bf16.mxu0 0
  %151 = vmatpush1.bf16.msra.mxu0 %v134
  %152 = vmatprep.subr.bf16.mxu0 0
  %153 = vmatpush1.bf16.msra.mxu0 %v135
  %154 = vmatprep.subr.bf16.mxu0 0
  %155 = vmatpush1.bf16.msra.mxu0 %v136
  %156 = vmatprep.subr.bf16.mxu0 0
  %157 = vmatpush1.bf16.msra.mxu0 %v137
  %158 = vmatprep.subr.bf16.mxu0 0
  %159 = vmatpush1.bf16.msra.mxu0 %v138
  %160 = vmatprep.subr.bf16.mxu0 0
  %161 = vmatpush1.bf16.msra.mxu0 %v139
  %162 = vmatprep.subr.bf16.mxu0 0
  %163 = vmatpush1.bf16.msra.mxu0 %v140
  %164 = vmatprep.subr.bf16.mxu0 0
  %165 = vmatpush1.bf16.msra.mxu0 %v141
  %166 = vmatprep.subr.bf16.mxu0 0
  %167 = vmatpush1.bf16.msra.mxu0 0
  %168 = vmatprep.subr.bf16.mxu0 0
  %169 = vmatpush1.bf16.msra.mxu0 0
  %170 = vmatprep.subr.bf16.mxu0 0
  %171 = vmatpush1.bf16.msra.mxu0 0
  %172 = vmatprep.subr.bf16.mxu0 0
  %173 = vmatpush1.bf16.msra.mxu0 0
  %174 = vmatprep.subr.bf16.mxu0 0
  %175 = vmatpush1.bf16.msra.mxu0 0
  %176 = vmatprep.subr.bf16.mxu0 0
  %177 = vmatpush1.bf16.msra.mxu0 0
  %178 = vmatprep.subr.bf16.mxu0 0
  %179 = vmatpush1.bf16.msra.mxu0 0
  %180 = vmatprep.subr.bf16.mxu0 0
  %181 = vmatpush1.bf16.msra.mxu0 0
  %182 = vmatprep.mubr.bf16.mxu0 0
  %183 = vmatmul.mubr.bf16.gmra.mrb[0].mxu0 %v86
  %v184 = vpop.f32.mrb[0].mxu0
  %v185 = vadd.f32 %v52, %v184
  %v186 = vpop.f32.mrb[0].mxu0
  %v187 = vpop.f32.mrb[0].mxu0
  %v188 = vadd.f32 %v52, %v187
  %v189 = vpop.f32.mrb[0].mxu0
  %190 = vmatprep.mubr.bf16.mxu0 0
  %191 = vmatmul.mubr.bf16.gmra.mrb[0].mxu0 %v87
  %v192 = vpop.f32.mrb[0].mxu0
  %v193 = vadd.f32 %v52, %v192
  %v194 = vpop.f32.mrb[0].mxu0
  %v195 = vpop.f32.mrb[0].mxu0
  %v196 = vadd.f32 %v52, %v195
  %v197 = vpop.f32.mrb[0].mxu0
  %198 = vmatprep.mubr.bf16.mxu0 0
  %199 = vmatmul.mubr.bf16.gmra.mrb[0].mxu0 %v88
  %v200 = vpop.f32.mrb[0].mxu0
  %v201 = vadd.f32 %v52, %v200
  %v202 = vpop.f32.mrb[0].mxu0
  %v203 = vpop.f32.mrb[0].mxu0
  %v204 = vadd.f32 %v52, %v203
  %v205 = vpop.f32.mrb[0].mxu0
  %206 = vmatprep.mubr.bf16.mxu0 0
  %207 = vmatmul.mubr.bf16.gmra.mrb[0].mxu0 %v89
  %v208 = vpop.f32.mrb[0].mxu0
  %v209 = vadd.f32 %v52, %v208
  %v210 = vpop.f32.mrb[0].mxu0
  %v211 = vpop.f32.mrb[0].mxu0
  %v212 = vadd.f32 %v52, %v211
  %v213 = vpop.f32.mrb[0].mxu0
  %214 = vmatprep.mubr.bf16.mxu0 0
  %215 = vmatmul.mubr.bf16.gmra.mrb[0].mxu0 %v90
  %v216 = vpop.f32.mrb[0].mxu0
  %v217 = vadd.f32 %v52, %v216
  %v218 = vpop.f32.mrb[0].mxu0
  %v219 = vpop.f32.mrb[0].mxu0
  %v220 = vadd.f32 %v52, %v219
  %v221 = vpop.f32.mrb[0].mxu0
  %222 = vmatprep.mubr.bf16.mxu0 0
  %223 = vmatmul.mubr.bf16.gmra.mrb[0].mxu0 %v91
  %v224 = vpop.f32.mrb[0].mxu0
  %v225 = vadd.f32 %v52, %v224
  %v226 = vpop.f32.mrb[0].mxu0
  %v227 = vpop.f32.mrb[0].mxu0
  %v228 = vadd.f32 %v52, %v227
  %v229 = vpop.f32.mrb[0].mxu0
  %230 = vmatprep.mubr.bf16.mxu0 0
  %231 = vmatmul.mubr.bf16.gmra.mrb[0].mxu0 %v92
  %v232 = vpop.f32.mrb[0].mxu0
  %v233 = vadd.f32 %v52, %v232
  %v234 = vpop.f32.mrb[0].mxu0
  %v235 = vpop.f32.mrb[0].mxu0
  %v236 = vadd.f32 %v52, %v235
  %v237 = vpop.f32.mrb[0].mxu0
  %238 = vmatprep.mubr.bf16.mxu0 0
  %239 = vmatmul.mubr.bf16.gmra.mrb[0].mxu0 %v93
  %v240 = vpop.f32.mrb[0].mxu0
  %v241 = vadd.f32 %v52, %v240
  %v242 = vpop.f32.mrb[0].mxu0
  %v243 = vpop.f32.mrb[0].mxu0
  %v244 = vadd.f32 %v52, %v243
  %v245 = vpop.f32.mrb[0].mxu0
  %246 = vdwg.mxu0
  %vm247 = vcmp.ge.f32.partialorder %v185, 0.0
  %vm248 = vcmp.ge.f32.partialorder %v188, 0.0
  %vm249 = vcmp.ge.f32.partialorder %v193, 0.0
  %vm250 = vcmp.ge.f32.partialorder %v196, 0.0
  %vm251 = vcmp.ge.f32.partialorder %v201, 0.0
  %vm252 = vcmp.ge.f32.partialorder %v204, 0.0
  %vm253 = vcmp.ge.f32.partialorder %v209, 0.0
  %vm254 = vcmp.ge.f32.partialorder %v212, 0.0
  %vm255 = vcmp.ge.f32.partialorder %v217, 0.0
  %vm256 = vcmp.ge.f32.partialorder %v220, 0.0
  %vm257 = vcmp.ge.f32.partialorder %v225, 0.0
  %vm258 = vcmp.ge.f32.partialorder %v228, 0.0
  %vm259 = vcmp.ge.f32.partialorder %v233, 0.0
  %vm260 = vcmp.ge.f32.partialorder %v236, 0.0
  %vm261 = vcmp.ge.f32.partialorder %v241, 0.0
  %vm262 = vcmp.ge.f32.partialorder %v244, 0.0
  %v263 = vmul.f32 %v185, 0.01
  %v264 = vmul.f32 %v188, 0.01
  %v265 = vmul.f32 %v193, 0.01
  %v266 = vmul.f32 %v196, 0.01
  %v267 = vmul.f32 %v201, 0.01
  %v268 = vmul.f32 %v204, 0.01
  %v269 = vmul.f32 %v209, 0.01
  %v270 = vmul.f32 %v212, 0.01
  %v271 = vmul.f32 %v217, 0.01
  %v272 = vmul.f32 %v220, 0.01
  %v273 = vmul.f32 %v225, 0.01
  %v274 = vmul.f32 %v228, 0.01
  %v275 = vmul.f32 %v233, 0.01
  %v276 = vmul.f32 %v236, 0.01
  %v277 = vmul.f32 %v241, 0.01
  %v278 = vmul.f32 %v244, 0.01
  %v279 = vsel %vm247, %v185, %v263
  %v280 = vsel %vm248, %v188, %v264
  %v281 = vsel %vm249, %v193, %v265
  %v282 = vsel %vm250, %v196, %v266
  %v283 = vsel %vm251, %v201, %v267
  %v284 = vsel %vm252, %v204, %v268
  %v285 = vsel %vm253, %v209, %v269
  %v286 = vsel %vm254, %v212, %v270
  %v287 = vsel %vm255, %v217, %v271
  %v288 = vsel %vm256, %v220, %v272
  %v289 = vsel %vm257, %v225, %v273
  %v290 = vsel %vm258, %v228, %v274
  %v291 = vsel %vm259, %v233, %v275
  %v292 = vsel %vm260, %v236, %v276
  %v293 = vsel %vm261, %v241, %v277
  %v294 = vsel %vm262, %v244, %v278
  %v295 = vpack.c.bf16 %v280, %v279
  %v296 = vpack.c.bf16 %v282, %v281
  %v297 = vpack.c.bf16 %v284, %v283
  %v298 = vpack.c.bf16 %v286, %v285
  %v299 = vpack.c.bf16 %v288, %v287
  %v300 = vpack.c.bf16 %v290, %v289
  %v301 = vpack.c.bf16 %v292, %v291
  %v302 = vpack.c.bf16 %v294, %v293
  %v311 = vunpack.c.l.b16 %v295
  %v312 = vunpack.c.h.b16 %v295
  %v313 = vunpack.c.l.b16 %v296
  %v314 = vunpack.c.h.b16 %v296
  %v315 = vunpack.c.l.b16 %v297
  %v316 = vunpack.c.h.b16 %v297
  %v317 = vunpack.c.l.b16 %v298
  %v318 = vunpack.c.h.b16 %v298
  %v319 = vunpack.c.l.b16 %v299
  %v320 = vunpack.c.h.b16 %v299
  %v321 = vunpack.c.l.b16 %v300
  %v322 = vunpack.c.h.b16 %v300
  %v323 = vunpack.c.l.b16 %v301
  %v324 = vunpack.c.h.b16 %v301
  %v325 = vunpack.c.l.b16 %v302
  %v326 = vunpack.c.h.b16 %v302
  %v327 = vpack.c.b16 %v311, %v311
  %v328 = vpack.c.b16 %v312, %v312
  %v329 = vpack.c.b16 %v313, %v313
  %v330 = vpack.c.b16 %v314, %v314
  %v331 = vpack.c.b16 %v315, %v315
  %v332 = vpack.c.b16 %v316, %v316
  %v333 = vpack.c.b16 %v317, %v317
  %v334 = vpack.c.b16 %v318, %v318
  %v335 = vpack.c.b16 %v319, %v319
  %v336 = vpack.c.b16 %v320, %v320
  %v337 = vpack.c.b16 %v321, %v321
  %v338 = vpack.c.b16 %v322, %v322
  %v339 = vpack.c.b16 %v323, %v323
  %v340 = vpack.c.b16 %v324, %v324
  %v341 = vpack.c.b16 %v325, %v325
  %v342 = vpack.c.b16 %v326, %v326
  %vm359 = vcmask 60416
  %360 = vst.msk [vmem:[%s3] sm:$0xf] %vm359, %v327
  %361 = vst.msk [vmem:[%s3 + $0x4] sm:$0xf] %vm359, %v328
  %362 = vst.msk [vmem:[%s3 + $0x8] sm:$0xf] %vm359, %v329
  %363 = vst.msk [vmem:[%s3 + $0xc] sm:$0xf] %vm359, %v330
  %364 = vst.msk [vmem:[%s3 + $0x10] sm:$0xf] %vm359, %v331
  %365 = vst.msk [vmem:[%s3 + $0x14] sm:$0xf] %vm359, %v332
  %366 = vst.msk [vmem:[%s3 + $0x18] sm:$0xf] %vm359, %v333
  %367 = vst.msk [vmem:[%s3 + $0x1c] sm:$0xf] %vm359, %v334
  %368 = vst.msk [vmem:[%s3 + $0x20] sm:$0xf] %vm359, %v335
  %369 = vst.msk [vmem:[%s3 + $0x24] sm:$0xf] %vm359, %v336
  %370 = vst.msk [vmem:[%s3 + $0x28] sm:$0xf] %vm359, %v337
  %371 = vst.msk [vmem:[%s3 + $0x2c] sm:$0xf] %vm359, %v338
  %372 = vst.msk [vmem:[%s3 + $0x30] sm:$0xf] %vm359, %v339
  %373 = vst.msk [vmem:[%s3 + $0x34] sm:$0xf] %vm359, %v340
  %374 = vst.msk [vmem:[%s3 + $0x38] sm:$0xf] %vm359, %v341
  %375 = vst.msk [vmem:[%s3 + $0x3c] sm:$0xf] %vm359, %v342
  // Predicated region
  $region14: #{_lambda_.2} parent=0 // pred_check
    _
  $region15: #{_lambda_.2} parent=0 // pred_check_branch
    %377 = sbr.rel (0) target = $region17
  $region16: #{_lambda_.2} parent=0 // pred_region
    _
  $region17: #{_lambda_.2} parent=0 // pred_fallthru
    _
  // Predicated region
  $region18: #{_lambda_.2} parent=0 // pred_check
    _
  $region19: #{_lambda_.2} parent=0 // pred_check_branch
    %379 = sbr.rel (0) target = $region21
  $region20: #{_lambda_.2} parent=0 // pred_region
    _
  $region21: #{_lambda_.2} parent=0 // pred_fallthru
    _

// kernel: _lambda_.3
$region0: #{_lambda_.3}
  #allocation0 [shape = 'u32[]', space=smem, size = 0x4, offset = 0x4, fixed_abs, tag = 'smem constant byte address 0x4 - core index']
  #allocation1 [shape = 'u32[144,128]{1,0:T(1,128)}', space=vmem, size = 0x12000, scoped, tag = 'internal scratch']
  %s0 = inlined_call_operand.vmem [shape: bf16[32,128], index: 0, kind: input, shape index: {}]
  %s1 = inlined_call_operand.vmem [shape: bf16[128,16], index: 1, kind: input, shape index: {}]
  %s2 = inlined_call_operand.vmem [shape: f32[1,16], index: 2, kind: input, shape index: {}]
  %s3 = inlined_call_operand.vmem [shape: bf16[32,16], index: 3, kind: output, shape index: {}]
  %s4 = sld [smem:[#allocation0]]
  $region22: #{_lambda_.3} parent=0
    _
  %s6 = ssub.s32 1, %s4
  %s7 = scalar_select 0, %s6, %s4
  // Predicated region
  $region2: #{_lambda_.3} parent=0 // pred_check
    _
  $region3: #{_lambda_.3} parent=0 // pred_check_branch
    %9 = sbr.rel (0) target = $region5
  $region4: #{_lambda_.3} parent=0 // pred_region
    _
  $region5: #{_lambda_.3} parent=0 // pred_fallthru
    _
  // Predicated region
  $region6: #{_lambda_.3} parent=0 // pred_check
    _
  $region7: #{_lambda_.3} parent=0 // pred_check_branch
    %11 = sbr.rel (0) target = $region9
  $region8: #{_lambda_.3} parent=0 // pred_region
    _
  $region9: #{_lambda_.3} parent=0 // pred_fallthru
    _
  // Predicated region
  $region10: #{_lambda_.3} parent=0 // pred_check
    _
  $region11: #{_lambda_.3} parent=0 // pred_check_branch
    %13 = sbr.rel (0) target = $region13
  $region12: #{_lambda_.3} parent=0 // pred_region
    _
  $region13: #{_lambda_.3} parent=0 // pred_fallthru
    _
  %v15 = vld [vmem:[%s0] sm:$0xf]
  %v16 = vld [vmem:[%s0 + $0x4] sm:$0xf]
  %v17 = vld [vmem:[%s0 + $0x8] sm:$0xf]
  %v18 = vld [vmem:[%s0 + $0xc] sm:$0xf]
  %v19 = vld [vmem:[%s1] sm:$0xf]
  %v20 = vld [vmem:[%s1 + $0x4] sm:$0xf]
  %v21 = vld [vmem:[%s1 + $0x8] sm:$0xf]
  %v22 = vld [vmem:[%s1 + $0xc] sm:$0xf]
  %v23 = vld [vmem:[%s1 + $0x10] sm:$0xf]
  %v24 = vld [vmem:[%s1 + $0x14] sm:$0xf]
  %v25 = vld [vmem:[%s1 + $0x18] sm:$0xf]
  %v26 = vld [vmem:[%s1 + $0x1c] sm:$0xf]
  %v27 = vld [vmem:[%s1 + $0x20] sm:$0xf]
  %v28 = vld [vmem:[%s1 + $0x24] sm:$0xf]
  %v29 = vld [vmem:[%s1 + $0x28] sm:$0xf]
  %v30 = vld [vmem:[%s1 + $0x2c] sm:$0xf]
  %v31 = vld [vmem:[%s1 + $0x30] sm:$0xf]
  %v32 = vld [vmem:[%s1 + $0x34] sm:$0xf]
  %v33 = vld [vmem:[%s1 + $0x38] sm:$0xf]
  %v34 = vld [vmem:[%s1 + $0x3c] sm:$0xf]
  %v35 = vld [vmem:[%s2] sm:$0x1]
  %v37 = vlaneseq
  %v38 = vshrl.u32 %v37, 7
  %v39 = vsub.s32 0, %v38
  %v40 = vrot.slane %v35, %v39
  %v46 = vunpack.c.l.b16 %v15
  %v47 = vunpack.c.l.b16 %v16
  %v48 = vunpack.c.l.b16 %v17
  %v49 = vunpack.c.l.b16 %v18
  %v50 = vpack.c.b16 %v47, %v46
  %v51 = vpack.c.b16 %v49, %v48
  %v70 = vunpack.c.l.b16 %v19
  %v71 = vunpack.c.l.b16 %v20
  %v72 = vunpack.c.l.b16 %v21
  %v73 = vunpack.c.l.b16 %v22
  %v74 = vunpack.c.l.b16 %v23
  %v75 = vunpack.c.l.b16 %v24
  %v76 = vunpack.c.l.b16 %v25
  %v77 = vunpack.c.l.b16 %v26
  %v78 = vunpack.c.l.b16 %v27
  %v79 = vunpack.c.l.b16 %v28
  %v80 = vunpack.c.l.b16 %v29
  %v81 = vunpack.c.l.b16 %v30
  %v82 = vunpack.c.l.b16 %v31
  %v83 = vunpack.c.l.b16 %v32
  %v84 = vunpack.c.l.b16 %v33
  %v85 = vunpack.c.l.b16 %v34
  %v86 = vpack.c.b16 %v71, %v70
  %v87 = vpack.c.b16 %v73, %v72
  %v88 = vpack.c.b16 %v75, %v74
  %v89 = vpack.c.b16 %v77, %v76
  %v90 = vpack.c.b16 %v79, %v78
  %v91 = vpack.c.b16 %v81, %v80
  %v92 = vpack.c.b16 %v83, %v82
  %v93 = vpack.c.b16 %v85, %v84
  %102 = vmatprep.subr.bf16.mxu0 0
  %103 = vmatpush1.bf16.msra.mxu0 %v86
  %104 = vmatprep.subr.bf16.mxu0 0
  %105 = vmatpush1.bf16.msra.mxu0 %v87
  %106 = vmatprep.subr.bf16.mxu0 0
  %107 = vmatpush1.bf16.msra.mxu0 %v88
  %108 = vmatprep.subr.bf16.mxu0 0
  %109 = vmatpush1.bf16.msra.mxu0 %v89
  %110 = vmatprep.subr.bf16.mxu0 0
  %111 = vmatpush1.bf16.msra.mxu0 %v90
  %112 = vmatprep.subr.bf16.mxu0 0
  %113 = vmatpush1.bf16.msra.mxu0 %v91
  %114 = vmatprep.subr.bf16.mxu0 0
  %115 = vmatpush1.bf16.msra.mxu0 %v92
  %116 = vmatprep.subr.bf16.mxu0 0
  %117 = vmatpush1.bf16.msra.mxu0 %v93
  %118 = vmatprep.subr.bf16.mxu0 0
  %119 = vmatpush1.bf16.msra.mxu0 0
  %120 = vmatprep.subr.bf16.mxu0 0
  %121 = vmatpush1.bf16.msra.mxu0 0
  %122 = vmatprep.subr.bf16.mxu0 0
  %123 = vmatpush1.bf16.msra.mxu0 0
  %124 = vmatprep.subr.bf16.mxu0 0
  %125 = vmatpush1.bf16.msra.mxu0 0
  %126 = vmatprep.subr.bf16.mxu0 0
  %127 = vmatpush1.bf16.msra.mxu0 0
  %128 = vmatprep.subr.bf16.mxu0 0
  %129 = vmatpush1.bf16.msra.mxu0 0
  %130 = vmatprep.subr.bf16.mxu0 0
  %131 = vmatpush1.bf16.msra.mxu0 0
  %132 = vmatprep.subr.bf16.mxu0 0
  %133 = vmatpush1.bf16.msra.mxu0 0
  %134 = vmatprep.mubr.bf16.mxu0 0
  %135 = vmatmul.mubr.bf16.gmra.mrb[0].mxu0 %v50
  %v136 = vpop.f32.mrb[0].mxu0
  %v137 = vadd.f32 %v40, %v136
  %v138 = vpop.f32.mrb[0].mxu0
  %v139 = vpop.f32.mrb[0].mxu0
  %v140 = vadd.f32 %v40, %v139
  %v141 = vpop.f32.mrb[0].mxu0
  %142 = vmatprep.mubr.bf16.mxu0 0
  %143 = vmatmul.mubr.bf16.gmra.mrb[0].mxu0 %v51
  %v144 = vpop.f32.mrb[0].mxu0
  %v145 = vadd.f32 %v40, %v144
  %v146 = vpop.f32.mrb[0].mxu0
  %v147 = vpop.f32.mrb[0].mxu0
  %v148 = vadd.f32 %v40, %v147
  %v149 = vpop.f32.mrb[0].mxu0
  %150 = vdwg.mxu0
  %vm151 = vcmp.ge.f32.partialorder %v137, 0.0
  %vm152 = vcmp.ge.f32.partialorder %v140, 0.0
  %vm153 = vcmp.ge.f32.partialorder %v145, 0.0
  %vm154 = vcmp.ge.f32.partialorder %v148, 0.0
  %v155 = vmul.f32 %v137, 0.01
  %v156 = vmul.f32 %v140, 0.01
  %v157 = vmul.f32 %v145, 0.01
  %v158 = vmul.f32 %v148, 0.01
  %v159 = vsel %vm151, %v137, %v155
  %v160 = vsel %vm152, %v140, %v156
  %v161 = vsel %vm153, %v145, %v157
  %v162 = vsel %vm154, %v148, %v158
  %v163 = vpack.c.bf16 %v160, %v159
  %v164 = vpack.c.bf16 %v162, %v161
  %v167 = vunpack.c.l.b16 %v163
  %v168 = vunpack.c.h.b16 %v163
  %v169 = vunpack.c.l.b16 %v164
  %v170 = vunpack.c.h.b16 %v164
  %v171 = vpack.c.b16 %v167, %v167
  %v172 = vpack.c.b16 %v168, %v168
  %v173 = vpack.c.b16 %v169, %v169
  %v174 = vpack.c.b16 %v170, %v170
  %vm179 = vcmask 125952
  %180 = vst.msk [vmem:[%s3] sm:$0xf] %vm179, %v171
  %181 = vst.msk [vmem:[%s3 + $0x4] sm:$0xf] %vm179, %v172
  %182 = vst.msk [vmem:[%s3 + $0x8] sm:$0xf] %vm179, %v173
  %183 = vst.msk [vmem:[%s3 + $0xc] sm:$0xf] %vm179, %v174
  // Predicated region
  $region14: #{_lambda_.3} parent=0 // pred_check
    _
  $region15: #{_lambda_.3} parent=0 // pred_check_branch
    %185 = sbr.rel (0) target = $region17
  $region16: #{_lambda_.3} parent=0 // pred_region
    _
  $region17: #{_lambda_.3} parent=0 // pred_fallthru
    _
  // Predicated region
  $region18: #{_lambda_.3} parent=0 // pred_check
    _
  $region19: #{_lambda_.3} parent=0 // pred_check_branch
    %187 = sbr.rel (0) target = $region21
  $region20: #{_lambda_.3} parent=0 // pred_region
    _
  $region21: #{_lambda_.3} parent=0 // pred_fallthru
    _

</llo_original>
